<compile_context>
chip_gen: v7x
topology: tpu7x:2x2x1
jax: 0.10.0
libtpu: 0.0.40
codegen_flags: <defaults>
</compile_context>

<pallas_src>
import functools

import jax
import jax.numpy as jnp
from jax.experimental import pallas as pl
from jax.experimental.pallas import tpu as pltpu


def _round_up(x: int, k: int) -> int:
    return ((x + k - 1) // k) * k


def _cdiv(a: int, b: int) -> int:
    return -(-a // b)


def _chip_info():
    """Returns (tensorcores_per_chip, vmem_capacity_bytes) with safe fallbacks."""
    cores = 1
    vmem_cap = 128 << 20
    try:
        info = pltpu.get_tpu_info()
        vmem_cap = int(getattr(info, "vmem_capacity_bytes", vmem_cap))
        for attr in ("num_cores", "tensorcores_per_chip", "cores_per_chip",
                     "num_tensorcores", "core_count"):
            v = getattr(info, attr, None)
            if isinstance(v, int) and v > 0:
                cores = v
                break
    except Exception:
        pass
    try:
        kind = jax.devices()[0].device_kind.lower()
        if "v7" in kind:
            cores = max(cores, 2)
            vmem_cap = min(vmem_cap, 64 << 20)  # 64 MiB per TC on v7x
    except Exception:
        pass
    return cores, vmem_cap


def _percentage_loss_kernel(yhat_ref, y_ref, out_ref, acc_ref, *, scale,
                            m, n, tile_rows, block_cols, steps, acc_rows,
                            need_row_mask, need_col_mask, approx_recip):
    p = pl.program_id(0)   # core-parallel axis
    c = pl.program_id(1)   # column (lane) blocks -- reduction
    j = pl.program_id(2)   # row blocks           -- reduction

    @pl.when((c == 0) & (j == 0))
    def _():
        acc_ref[...] = jnp.zeros_like(acc_ref)

    yhat = yhat_ref[...].astype(jnp.float32)
    y = y_ref[...].astype(jnp.float32)

    if need_row_mask or need_col_mask:
        mask = None
        if need_row_mask:
            row_start = (p * steps + j) * tile_rows
            rid = jax.lax.broadcasted_iota(jnp.int32, (tile_rows, block_cols), 0)
            mask = (rid + row_start) < m
        if need_col_mask:
            cid = jax.lax.broadcasted_iota(jnp.int32, (tile_rows, block_cols), 1)
            cmask = (cid + c * block_cols) < n
            mask = cmask if mask is None else (mask & cmask)
        # Mask BOTH operands to 1.0 BEFORE the reciprocal: padded / duplicated
        # elements then contribute |1-1| + 0 = 0 and 1/y stays finite.
        y = jnp.where(mask, y, 1.0)
        yhat = jnp.where(mask, yhat, 1.0)

    d = jnp.abs(yhat - y)
    # (|d| + d^2) / y  ->  EUP reciprocal + VPU multiply.
    val = (d + d * d) * pl.reciprocal(y, approx=approx_recip)

    # Fold sublane groups into the lane-resident accumulator (pure VPU adds,
    # acc_rows independent partial rows hide the add latency).
    acc_ref[...] += val.reshape(tile_rows // acc_rows, acc_rows, block_cols).sum(axis=0)

    @pl.when((c == pl.num_programs(1) - 1) & (j == pl.num_programs(2) - 1))
    def _():
        # Single cross-lane reduce + normalization, once per parallel slice.
        out_ref[0, 0] = jnp.sum(acc_ref[...]) * scale


def percentage_loss(yhat: jax.Array, y: jax.Array, *,
                    target_block_bytes: int | None = None,
                    max_block_cols: int = 16384) -> jax.Array:
    """Pallas implementation of PercentageLoss.forward(yHat, y)."""
    assert yhat.shape == y.shape and yhat.ndim == 2
    m, n = y.shape
    itemsize = jnp.dtype(yhat.dtype).itemsize

    num_cores, vmem_cap = _chip_info()
    if target_block_bytes is None:
        # ~2 MiB blocks on v7x (64 MiB VMEM, 2 TCs), ~4 MiB on 128 MiB 1-TC chips.
        target_block_bytes = (2 << 20) if num_cores >= 2 else (4 << 20)

    # ---- column (lane) tiling: bound the per-block footprint for wide n ----
    n_pad = _round_up(n, 128)
    max_block_cols = max(128, (max_block_cols // 128) * 128)
    block_cols = min(n_pad, max_block_cols)
    n_col_blocks = _cdiv(n, block_cols)

    # ---- row tiling ----
    bytes_per_row = block_cols * itemsize
    rows_target = max(8, (target_block_bytes // bytes_per_row) // 8 * 8)
    if rows_target >= 64:
        rows_target = (rows_target // 64) * 64      # enable the wide accumulator
    m_ceil8 = _round_up(m, 8)
    tile_rows = int(min(rows_target, m_ceil8))
    n_row_blocks = _cdiv(m, tile_rows)

    # ---- split across TensorCores (only where they exist) ----
    num_par = max(1, min(num_cores, n_row_blocks))
    steps = _cdiv(n_row_blocks, num_par)

    coverage_rows = num_par * steps * tile_rows
    need_row_mask = coverage_rows != m
    need_col_mask = (n_col_blocks * block_cols) != n
    acc_rows = 64 if tile_rows % 64 == 0 else 8

    # mean(percentDiff) / y.shape[0]  ==  sum / (m * n) / m
    scale = 1.0 / (float(m) * float(n) * float(m))
    approx_recip = num_cores >= 2   # keep v7x loop DMA-bound; exact elsewhere

    kernel = functools.partial(
        _percentage_loss_kernel, scale=scale, m=m, n=n,
        tile_rows=tile_rows, block_cols=block_cols, steps=steps,
        acc_rows=acc_rows, need_row_mask=need_row_mask,
        need_col_mask=need_col_mask, approx_recip=approx_recip)

    last_row_block = n_row_blocks - 1
    has_dup_blocks = num_par * steps > n_row_blocks

    def in_map(p, c, j):
        rb = p * steps + j
        if has_dup_blocks:
            # Leftover blocks from the even per-core split re-read the last
            # real block; the row mask zeroes their contribution.
            rb = jnp.minimum(rb, last_row_block)
        return (rb, c)

    block = (tile_rows, block_cols)

    # 2 inputs x 2 pipeline buffers + the accumulator, with slack; capped by
    # the actual chip VMEM (leave headroom for compiler scratch on v7x).
    vmem_need = 2 * 2 * tile_rows * block_cols * itemsize + acc_rows * block_cols * 4
    vmem_cap_use = max(32 << 20, int(0.75 * vmem_cap))
    vmem_limit = int(min(vmem_cap_use, max(32 << 20, 2 * vmem_need)))

    lead_sem = (getattr(pltpu, "CORE_PARALLEL", "parallel")
                if num_par > 1 else "arbitrary")

    partials = pl.pallas_call(
        kernel,
        out_shape=jax.ShapeDtypeStruct((num_par, 1), jnp.float32),
        grid_spec=pltpu.PrefetchScalarGridSpec(
            num_scalar_prefetch=0,
            grid=(num_par, n_col_blocks, steps),
            in_specs=[
                pl.BlockSpec(block, in_map),
                pl.BlockSpec(block, in_map),
            ],
            out_specs=pl.BlockSpec((1, 1), lambda p, c, j: (p, 0),
                                   memory_space=pltpu.SMEM),
            scratch_shapes=[pltpu.VMEM((acc_rows, block_cols), jnp.float32)],
        ),
        compiler_params=pltpu.CompilerParams(
            dimension_semantics=(lead_sem, "arbitrary", "arbitrary"),
            vmem_limit_bytes=vmem_limit,
        ),
    )(yhat, y)

    return jnp.sum(partials)


def _reference(yhat, y):
    d = jnp.abs(yhat.astype(jnp.float32) - y.astype(jnp.float32))
    return jnp.mean((d + d * d) / y.astype(jnp.float32)) / y.shape[0]


if __name__ == "__main__":
    key = jax.random.PRNGKey(0)

    def run_case(batch, feat, **kw):
        k1, k2 = jax.random.split(jax.random.fold_in(key, batch * 1000 + feat))
        # y strictly positive so the division is well-behaved (matches the
        # intended use of a percentage loss on positive targets).
        y = jax.random.uniform(k1, (batch, feat), jnp.float32,
                               minval=1.0, maxval=2.0)
        yhat = y + 0.1 * jax.random.normal(k2, (batch, feat), jnp.float32)

        out = jax.block_until_ready(percentage_loss(yhat, y, **kw))
        ref = jax.block_until_ready(_reference(yhat, y))
        # rtol loose enough for the approx (EUP) reciprocal used on v7x.
        assert jnp.allclose(out, ref, rtol=1e-3, atol=1e-6), (batch, feat, out, ref)

    # Ragged rows + ragged lanes: exercises the in-kernel masking path.
    run_case(13, 96)
    # Multi row-block (small target block forces several reduction steps).
    run_case(64, 256, target_block_bytes=16 * 1024)
    # Column tiling + both masks (tiny max_block_cols forces 3 lane blocks).
    run_case(50, 300, target_block_bytes=16 * 1024, max_block_cols=128)

    print("KERNEL_OK")
</pallas_src>

<mosaic_0001>
module attributes {stable_mosaic.version = 11 : i64} {
  func.func @_percentage_loss_kernel(%arg0: i32, %arg1: i32, %arg2: i32, %arg3: memref<16x128xf32, #tpu.memory_space<vmem>>, %arg4: memref<16x128xf32, #tpu.memory_space<vmem>>, %arg5: memref<1x1xf32, #tpu.memory_space<smem>>, %arg6: memref<8x128xf32, #tpu.memory_space<vmem>>) attributes {dimension_semantics = [#tpu.dimension_semantics<arbitrary>, #tpu.dimension_semantics<arbitrary>, #tpu.dimension_semantics<arbitrary>], iteration_bounds = array<i64: 1, 1, 1>, scalar_prefetch = 0 : i64, scratch_operands = 1 : i64, tpu.core_type = #tpu.core_type<tc>, window_params = [{transform_indices = @transform_0, window_bounds = array<i64: 16, 128>}, {transform_indices = @transform_1, window_bounds = array<i64: 16, 128>}, {transform_indices = @transform_2, window_bounds = array<i64: 1, 1>}]} {
    %c0_i32 = arith.constant 0 : i32
    %0 = arith.cmpi eq, %arg1, %c0_i32 : i32
    %c0_i32_0 = arith.constant 0 : i32
    %1 = arith.cmpi eq, %arg2, %c0_i32_0 : i32
    %2 = arith.andi %0, %1 : i1
    %3 = arith.extui %2 : i1 to i32
    %c0_i32_1 = arith.constant 0 : i32
    %4 = arith.cmpi ne, %3, %c0_i32_1 : i32
    scf.if %4 {
      %cst_14 = arith.constant 0.000000e+00 : f32
      %42 = vector.broadcast %cst_14 : f32 to vector<8x128xf32>
      %c0_15 = arith.constant 0 : index
      %c0_16 = arith.constant 0 : index
      %43 = vector.load %arg6[%c0_15, %c0_16] : memref<8x128xf32, #tpu.memory_space<vmem>>, vector<8x128xf32>
      tpu.vector_store %arg6[%c0_15, %c0_16], %42 {strides = array<i32>} : memref<8x128xf32, #tpu.memory_space<vmem>>, vector<8x128xf32>,
    } else {
    }
    %c0 = arith.constant 0 : index
    %c0_2 = arith.constant 0 : index
    %5 = vector.load %arg3[%c0, %c0_2] : memref<16x128xf32, #tpu.memory_space<vmem>>, vector<16x128xf32>
    %c0_3 = arith.constant 0 : index
    %c0_4 = arith.constant 0 : index
    %6 = vector.load %arg4[%c0_3, %c0_4] : memref<16x128xf32, #tpu.memory_space<vmem>>, vector<16x128xf32>
    %c1_i32 = arith.constant 1 : i32
    %7 = arith.muli %arg0, %c1_i32 : i32
    %8 = arith.addi %7, %arg2 : i32
    %c16_i32 = arith.constant 16 : i32
    %9 = arith.muli %8, %c16_i32 : i32
    %10 = tpu.iota {dimensions = array<i32: 0>} : vector<16x128xi32>
    %11 = vector.broadcast %9 : i32 to vector<16x128xi32>
    %12 = arith.addi %10, %11 : vector<16x128xi32>
    %c13_i32 = arith.constant 13 : i32
    %13 = vector.broadcast %c13_i32 : i32 to vector<16x128xi32>
    %14 = arith.cmpi slt, %12, %13 : vector<16x128xi32>
    %15 = tpu.iota {dimensions = array<i32: 1>} : vector<16x128xi32>
    %c128_i32 = arith.constant 128 : i32
    %16 = arith.muli %arg1, %c128_i32 : i32
    %17 = vector.broadcast %16 : i32 to vector<16x128xi32>
    %18 = arith.addi %15, %17 : vector<16x128xi32>
    %c96_i32 = arith.constant 96 : i32
    %19 = vector.broadcast %c96_i32 : i32 to vector<16x128xi32>
    %20 = arith.cmpi slt, %18, %19 : vector<16x128xi32>
    %21 = arith.andi %14, %20 : vector<16x128xi1>
    %cst = arith.constant 1.000000e+00 : f32
    %22 = vector.broadcast %cst : f32 to vector<16x128xf32>
    %23 = arith.select %21, %6, %22 : vector<16x128xi1>, vector<16x128xf32>
    %cst_5 = arith.constant 1.000000e+00 : f32
    %24 = vector.broadcast %cst_5 : f32 to vector<16x128xf32>
    %25 = arith.select %21, %5, %24 : vector<16x128xi1>, vector<16x128xf32>
    %26 = arith.subf %25, %23 : vector<16x128xf32>
    %27 = math.absf %26 : vector<16x128xf32>
    %28 = arith.mulf %27, %27 : vector<16x128xf32>
    %29 = arith.addf %27, %28 : vector<16x128xf32>
    %30 = tpu.reciprocal %23 : vector<16x128xf32> -> vector<16x128xf32>
    %31 = arith.mulf %29, %30 : vector<16x128xf32>
    %c0_6 = arith.constant 0 : index
    %c0_7 = arith.constant 0 : index
    %32 = vector.load %arg6[%c0_6, %c0_7] : memref<8x128xf32, #tpu.memory_space<vmem>>, vector<8x128xf32>
    %33 = vector.shape_cast %31 : vector<16x128xf32> to vector<2x8x128xf32>
    %cst_8 = arith.constant dense<0.000000e+00> : vector<8x128xf32>
    %34 = vector.multi_reduction <add>, %33, %cst_8 [0] : vector<2x8x128xf32> to vector<8x128xf32>
    %35 = arith.addf %32, %34 : vector<8x128xf32>
    %c0_9 = arith.constant 0 : index
    %c0_10 = arith.constant 0 : index
    %36 = vector.load %arg6[%c0_9, %c0_10] : memref<8x128xf32, #tpu.memory_space<vmem>>, vector<8x128xf32>
    tpu.vector_store %arg6[%c0_9, %c0_10], %35 {strides = array<i32>} : memref<8x128xf32, #tpu.memory_space<vmem>>, vector<8x128xf32>,
    %c0_i32_11 = arith.constant 0 : i32
    %37 = arith.cmpi eq, %arg1, %c0_i32_11 : i32
    %c0_i32_12 = arith.constant 0 : i32
    %38 = arith.cmpi eq, %arg2, %c0_i32_12 : i32
    %39 = arith.andi %37, %38 : i1
    %40 = arith.extui %39 : i1 to i32
    %c0_i32_13 = arith.constant 0 : i32
    %41 = arith.cmpi ne, %40, %c0_i32_13 : i32
    scf.if %41 {
      %c0_14 = arith.constant 0 : index
      %c0_15 = arith.constant 0 : index
      %42 = vector.load %arg6[%c0_14, %c0_15] : memref<8x128xf32, #tpu.memory_space<vmem>>, vector<8x128xf32>
      %43 = vector.shape_cast %42 : vector<8x128xf32> to vector<1x8x128xf32>
      %cst_16 = arith.constant dense<0.000000e+00> : vector<1xf32>
      %44 = vector.multi_reduction <add>, %43, %cst_16 [1, 2] : vector<1x8x128xf32> to vector<1xf32>
      %45 = vector.shape_cast %44 : vector<1xf32> to vector<1x1x1xf32>
      %46 = vector.extract %45[0, 0, 0] : f32 from vector<1x1x1xf32>
      %cst_17 = arith.constant 6.16370817E-5 : f32
      %47 = arith.mulf %46, %cst_17 : f32
      %c0_18 = arith.constant 0 : index
      %c0_19 = arith.constant 0 : index
      %48 = memref.load %arg5[%c0_18, %c0_19] : memref<1x1xf32, #tpu.memory_space<smem>>
      memref.store %47, %arg5[%c0_18, %c0_19] : memref<1x1xf32, #tpu.memory_space<smem>>
    } else {
    }
    return
  }
  func.func @transform_0(%arg0: i32, %arg1: i32, %arg2: i32) -> (i32, i32) {
    %c1_i32 = arith.constant 1 : i32
    %0 = arith.muli %arg0, %c1_i32 : i32
    %1 = arith.addi %0, %arg2 : i32
    %c0_i32 = arith.constant 0 : i32
    return %1, %arg1 : i32, i32
  }
  func.func @transform_1(%arg0: i32, %arg1: i32, %arg2: i32) -> (i32, i32) {
    %c1_i32 = arith.constant 1 : i32
    %0 = arith.muli %arg0, %c1_i32 : i32
    %1 = arith.addi %0, %arg2 : i32
    %c0_i32 = arith.constant 0 : i32
    return %1, %arg1 : i32, i32
  }
  func.func @transform_2(%arg0: i32, %arg1: i32, %arg2: i32) -> (i32, i32) {
    %c0_i32 = arith.constant 0 : i32
    %c0_i32_0 = arith.constant 0 : i32
    return %arg0, %c0_i32 : i32, i32
  }
}

</mosaic_0001>

<llo_original>
// kernel: tpu_custom_call.1
$region0: #{tpu_custom_call.1}
  #allocation0 [shape = 'u32[]', space=smem, size = 0x4, offset = 0x4, fixed_abs, tag = 'smem constant byte address 0x4 - core index']
  #allocation1 [shape = 'u32[144,128]{1,0:T(1,128)}', space=vmem, size = 0x12000, scoped, tag = 'internal scratch']
  #allocation2 [shape = 'f32[8,128]{1,0:T(8,128)}', space=vmem, size = 0x1000, scoped, tag = 'scratch operand']
  %s0 = inlined_call_operand.hbm [shape: f32[13,96], index: 0, kind: input, shape index: {}]
  %s1 = inlined_call_operand.hbm [shape: f32[13,96], index: 1, kind: input, shape index: {}]
  %s2 = inlined_call_operand.hbm [shape: f32[1,1], index: 2, kind: output, shape index: {}]
  %s3 = sld [smem:[#allocation0]]
  $region34: #{tpu_custom_call.1} parent=0
    _
  %s5 = ssub.s32 1, %s3
  %s6 = scalar_select 0, %s5, %s3
  $region1: #{tpu_custom_call.1} parent=0
    #allocation3 [shape = 'u8[8192]{0}', space=vmem, size = 0x2000, scoped, tag = 'input window, operand 0, single buffered']
    #allocation4 [shape = 's32[1]{0}', space=sflag, size = 0x4, scoped, tag = 'scoped memory for tpu_custom_call.1']
    #allocation5 [shape = 's32[1]{0}', space=sflag, size = 0x4, scoped, tag = 'scoped memory for tpu_custom_call.1']
    #allocation6 [shape = 'u8[8192]{0}', space=vmem, size = 0x2000, scoped, tag = 'input window, operand 1, single buffered']
    #allocation7 [shape = 's32[1]{0}', space=sflag, size = 0x4, scoped, tag = 'scoped memory for tpu_custom_call.1']
    #allocation8 [shape = 'u8[512]{0}', space=smem, size = 0x200, scoped, tag = 'output window, operand 0, single buffered']
    %7 = vsyncpa [#allocation4], 0
    %8 = vsyncpa [#allocation7], 0
    %9 = vsyncpa [#allocation5], 0
    // Predicated region
    $region2: #{tpu_custom_call.1} parent=1 // pred_check
      _
    $region3: #{tpu_custom_call.1} parent=1 // pred_check_branch
      %11 = sbr.rel (0) target = $region5
    $region4: #{tpu_custom_call.1} parent=1 // pred_region
      %s12 = sadd.s32 0, 0
      %s13 = smul.u32 2, %s12
      %s15 = ssub.s32 256, 256
      %16 = vsyncadd [#allocation4], %s15
      %s17 = smul.addr %s13, 128
      %s18 = scalar_lea.hbm %s0, %s17
      %s19 = sshll.u32 [#allocation3], 4
      %s20 = int_to_ptr.vmem [resolvable:$true] %s19
      %25 = dma.hbm_to_vmem [thread:$0]  %s18, 256, %s20, [#allocation4], 128, 128, 8
    $region5: #{tpu_custom_call.1} parent=1 // pred_fallthru
      _
    // Predicated region
    $region6: #{tpu_custom_call.1} parent=1 // pred_check
      _
    $region7: #{tpu_custom_call.1} parent=1 // pred_check_branch
      %27 = sbr.rel (0) target = $region9
    $region8: #{tpu_custom_call.1} parent=1 // pred_region
      %s28 = sadd.s32 0, 0
      %s29 = smul.u32 2, %s28
      %s31 = ssub.s32 256, 256
      %32 = vsyncadd [#allocation7], %s31
      %s33 = smul.addr %s29, 128
      %s34 = scalar_lea.hbm %s1, %s33
      %s35 = sshll.u32 [#allocation6], 4
      %s36 = int_to_ptr.vmem [resolvable:$true] %s35
      %41 = dma.hbm_to_vmem [thread:$0]  %s34, 256, %s36, [#allocation7], 128, 128, 8
    $region9: #{tpu_custom_call.1} parent=1 // pred_fallthru
      _
    // Predicated region
    $region10: #{tpu_custom_call.1} parent=1 // pred_check
      _
    $region11: #{tpu_custom_call.1} parent=1 // pred_check_branch
      %43 = sbr.rel (0) target = $region13
    $region12: #{tpu_custom_call.1} parent=1 // pred_region
      %44 = dma.done [#allocation4], 256
    $region13: #{tpu_custom_call.1} parent=1 // pred_fallthru
      _
    // Predicated region
    $region14: #{tpu_custom_call.1} parent=1 // pred_check
      _
    $region15: #{tpu_custom_call.1} parent=1 // pred_check_branch
      %46 = sbr.rel (0) target = $region17
    $region16: #{tpu_custom_call.1} parent=1 // pred_region
      %47 = dma.done [#allocation7], 256
    $region17: #{tpu_custom_call.1} parent=1 // pred_fallthru
      _
    %s48 = sadd.s32 0, 0
    %s49 = smul.u32 2, %s48
    %s50 = sadd.s32 0, 0
    %s51 = smul.u32 2, %s50
    %p52 = scmp.eq.s32.totalorder 0, 0
    %p53 = scmp.eq.s32.totalorder 0, 0
    %p54 = pnand %p52, %p53
    %p55 = pneg %p54
    // Predicated region
    $region18: #{tpu_custom_call.1} parent=1 // pred_check
      _
    $region19: #{tpu_custom_call.1} parent=1 // pred_check_branch
      %57 = sbr.rel (%p54) target = $region21
    $region20: #{tpu_custom_call.1} parent=1 // pred_region
      %58 = vst [vmem:[#allocation2] sm:$0xff] 0.0
    $region21: #{tpu_custom_call.1} parent=1 // pred_fallthru
      _
    %v59 = vld [vmem:[#allocation3] sm:$0xff]
    %v60 = vld [vmem:[#allocation3 + $0x8] sm:$0xff]
    %v61 = vld [vmem:[#allocation6] sm:$0xff]
    %v62 = vld [vmem:[#allocation6 + $0x8] sm:$0xff]
    %s63 = sadd.s32 0, 0
    %s64 = smul.u32 %s63, 16
    %v65 = vlaneseq
    %v66 = vshrl.u32 %v65, 7
    %v67 = vadd.s32 %v66, 8
    %v68 = vstv %s64
    %v69 = vadd.s32 %v66, %v68
    %v70 = vadd.s32 %v67, %v68
    %vm71 = vcmp.lt.s32.totalorder %v69, 13
    %vm72 = vcmp.lt.s32.totalorder %v70, 13
    %v73 = vlaneseq
    %v74 = vand.u32 %v73, 127
    %s75 = smul.u32 0, 128
    %v76 = vstv %s75
    %v77 = vadd.s32 %v74, %v76
    %vm78 = vcmp.lt.s32.totalorder %v77, 96
    %vm79 = vmand %vm71, %vm78
    %vm80 = vmand %vm72, %vm78
    %v81 = vsel %vm79, %v61, 1.0
    %v82 = vsel %vm80, %v62, 1.0
    %v83 = vsel %vm79, %v59, 1.0
    %v84 = vsel %vm80, %v60, 1.0
    %v85 = vsub.f32 %v83, %v81
    %v86 = vsub.f32 %v84, %v82
    %v87 = vand.u32 2147483647, %v85
    %v88 = vand.u32 2147483647, %v86
    %v89 = vmul.f32 %v87, %v87
    %v90 = vmul.f32 %v88, %v88
    %v91 = vadd.f32 %v87, %v89
    %v92 = vadd.f32 %v88, %v90
    %v93 = vrcp.pop %v81
    %v94 = vrcp.pop %v82
    %v95 = vmul.f32 %v91, %v93
    %v96 = vmul.f32 %v92, %v94
    %v97 = vld [vmem:[#allocation2] sm:$0xff]
    %v98 = vadd.f32 %v95, %v96
    %v99 = vadd.f32 %v97, %v98
    %100 = vst [vmem:[#allocation2] sm:$0xff] %v99
    // Predicated region
    $region22: #{tpu_custom_call.1} parent=1 // pred_check
      _
    $region23: #{tpu_custom_call.1} parent=1 // pred_check_branch
      %102 = sbr.rel (%p54) target = $region25
    $region24: #{tpu_custom_call.1} parent=1 // pred_region
      %v103 = vld [vmem:[#allocation2] sm:$0xff]
      %104 = vadd.xlane.f32.xlu0 %v103
      %v105 = vpop.xlane.xlu0 %104
      %v106 = vrot.slane %v105, 4
      %v107 = vadd.f32 %v105, %v106
      %v108 = vrot.slane %v107, 2
      %v109 = vadd.f32 %v107, %v108
      %v110 = vrot.slane %v109, 1
      %v111 = vadd.f32 %v109, %v110
      %s112 = vtos %v111
      %s113 = smul.f32 %s112, 6.163708e-05
      %s114 = scalar_lea.smem [#allocation8], 0
      %115 = sst [smem:[%s114]] %s113
    $region25: #{tpu_custom_call.1} parent=1 // pred_fallthru
      _
    // Predicated region
    $region26: #{tpu_custom_call.1} parent=1 // pred_check
      _
    $region27: #{tpu_custom_call.1} parent=1 // pred_check_branch
      %117 = sbr.rel (0) target = $region29
    $region28: #{tpu_custom_call.1} parent=1 // pred_region
      %s119 = ssub.s32 16, 16
      %120 = vsyncadd [#allocation5], %s119
      %123 = dma.smem_to_hbm [#allocation8], 16, %s2, [#allocation5]
    $region29: #{tpu_custom_call.1} parent=1 // pred_fallthru
      _
    // Predicated region
    $region30: #{tpu_custom_call.1} parent=1 // pred_check
      _
    $region31: #{tpu_custom_call.1} parent=1 // pred_check_branch
      %125 = sbr.rel (0) target = $region33
    $region32: #{tpu_custom_call.1} parent=1 // pred_region
      %126 = dma.done [#allocation5], 16
    $region33: #{tpu_custom_call.1} parent=1 // pred_fallthru
      _
    %127 = sfence
    %128 = vsyncpa [#allocation4], 1
    %129 = vsyncpa [#allocation7], 1
    %130 = vsyncpa [#allocation5], 1

</llo_original>
